<compile_context>
chip_gen: v7x
topology: tpu7x:2x2x1
jax: 0.10.0
libtpu: 0.0.40
codegen_flags: <defaults>
</compile_context>

<pallas_src>
import functools
import inspect

import jax
import jax.numpy as jnp
from jax.experimental import pallas as pl
from jax.experimental.pallas import tpu as pltpu


try:
    _HAS_PIPELINE_MODE = (hasattr(pl, "Buffered")
                          and "pipeline_mode" in inspect.signature(pl.BlockSpec).parameters)
except (TypeError, ValueError):  # pragma: no cover
    _HAS_PIPELINE_MODE = False


def attention_kernel(enc_h_ref, prev_s_ref,
                     w_enc_ref, b_enc_ref,
                     w_prev_ref, b_prev_ref,
                     w_lin_ref,
                     ctx_ref,
                     prev_proj_ref,
                     *, tanh_dtype):
    t = pl.program_id(1)                         # S-tile index within this core's range
    B, TS, D2 = enc_h_ref.shape
    H = w_enc_ref.shape[1]

    # ---- One-time (S-invariant) work per core: prev_s projection (b_enc folded
    # in so the per-tile add disappears) + output-accumulator init.
    @pl.when(t == 0)
    def _():
        pp = jnp.dot(prev_s_ref[...], w_prev_ref[...],
                     preferred_element_type=jnp.float32)          # (B, H)
        pp = pp + b_prev_ref[...] + b_enc_ref[...]                # fold b_enc here
        prev_proj_ref[...] = pp[:, None, :]                       # one dense store
        ctx_ref[...] = jnp.zeros_like(ctx_ref)

    # ---- Per-tile heavy work (vectorized over batch AND the S tile).
    enc_h = enc_h_ref[...]                                        # (B, TS, 2H)
    enc_flat = enc_h.reshape(B * TS, D2)                          # TS % 8 == 0 -> layout no-op
    enc_proj = jnp.dot(enc_flat, w_enc_ref[...],
                       preferred_element_type=jnp.float32)        # (B*TS, H)
    x = enc_proj.reshape(B, TS, H) + prev_proj_ref[...]           # (B, TS, H)

    h = jnp.tanh(x.astype(tanh_dtype))
    # Linear(H, 1) as a lane reduction; b_lin dropped (a constant shift on the
    # scores cancels exactly under softmax on any axis).
    scores = jnp.sum((h * w_lin_ref[...].astype(tanh_dtype)).astype(jnp.float32),
                     axis=-1, keepdims=True)                      # (B, TS, 1)

    # Legacy softmax over the BATCH dimension -> every S position independent,
    # so S tiles just accumulate.  Exact divide (approx recip broke parity).
    m = jnp.max(scores, axis=0, keepdims=True)
    e = jnp.exp(scores - m)
    denom = jnp.sum(e, axis=0, keepdims=True)
    alpha = e / denom
    # TODO(synk): lane-dense (B, TS) softmax layout would use >1 of 128 lanes;
    # only worth revisiting on v7x once HBM no longer hides this chain.

    # This tile's ctx contribution; padded (zero) enc_h rows contribute exactly 0.
    ctx_ref[...] += jnp.sum(alpha * enc_h.astype(jnp.float32), axis=1)


def _round_up(x, m):
    return ((x + m - 1) // m) * m


def _tpu_generation():
    try:
        kind = jax.devices()[0].device_kind.lower()
    except Exception:
        return "other"
    if "v5 lite" in kind or "v5e" in kind or "v5lite" in kind:
        return "v5e"
    if "v6" in kind:
        return "v6e"
    if "v7" in kind or "7x" in kind:
        return "v7x"
    return "other"


_VMEM_BUDGET_BYTES = {"v5e": 12 << 20, "v6e": 24 << 20, "v7x": 24 << 20}
_TILE_CAP = {"v5e": 512, "v6e": 1024, "v7x": 1024}


def _choose_tile_s(B, S, D2, H, gen, enc_itemsize, weight_buffers):
    """Size the streamed enc_h tile against the generation's scoped-VMEM budget
    after subtracting the resident (weights/biases/scratch/output) footprint."""
    budget = _VMEM_BUDGET_BYTES.get(gen, 12 << 20)
    resident = 4 * (weight_buffers * (D2 * H + H * H)   # w_enc^T, w_prev^T
                    + 3 * 8 * 128                       # b_enc, b_prev, w_lin (vreg-padded)
                    + B * H                             # prev_s
                    + B * H                             # prev_proj scratch
                    + 2 * B * D2)                       # output block (double-buffered)
    stream = max(budget - resident - (2 << 20), budget // 4)   # 2 MiB headroom
    per_row = 2 * B * D2 * enc_itemsize                 # double-buffered enc_h rows
    ts = (stream // per_row) // 8 * 8
    ts = min(ts, _TILE_CAP.get(gen, 512), _round_up(S, 8))
    return max(8, int(ts))


def prepare_params(params):
    """One-time conversion of PyTorch-layout params (weight (out,in), bias (out,))
    to kernel layout.  Hoists the .T transposes out of the per-call hot path."""
    w_enc, b_enc, w_prev, b_prev, w_lin, b_lin = params
    del b_lin   # constant shift on the scores: exact no-op under softmax
    H = w_prev.shape[0]
    return (jnp.asarray(w_enc).T,             # (2H, H)
            jnp.asarray(b_enc).reshape(1, H),
            jnp.asarray(w_prev).T,            # (H, H)
            jnp.asarray(b_prev).reshape(1, H),
            jnp.asarray(w_lin).reshape(1, 1, H))


def attention_pallas(enc_h, prev_s, prepared_params, *, tile_s=None, tanh_dtype=None):
    """enc_h: (B, S, 2H); prev_s: (B, H) -> ctx: (B, 2H) f32."""
    w_enc_t, b_enc, w_prev_t, b_prev, w_lin = prepared_params
    B, S, D2 = enc_h.shape
    H = prev_s.shape[-1]
    assert D2 == 2 * H

    gen = _tpu_generation()
    num_splits = 2 if gen == "v7x" else 1     # use both TensorCores on v7x
    if tanh_dtype is None:
        # bf16 tanh/score is the recommended v7x setting; kept f32 here so the
        # demo matches the f32 reference tightly.  (Never use bf16 on v5e.)
        tanh_dtype = jnp.float32

    weight_buffers = 1 if _HAS_PIPELINE_MODE else 2
    if tile_s is None:
        tile_s = _choose_tile_s(B, S, D2, H, gen, enc_h.dtype.itemsize, weight_buffers)
    tile_s = max(8, (tile_s // 8) * 8)        # sublane-aligned (layout no-op fold)

    S_pad = _round_up(S, tile_s * num_splits)
    if S_pad != S:
        # Zero rows are exact: their ctx contribution is alpha * 0 == 0.
        enc_h = jnp.pad(enc_h, ((0, 0), (0, S_pad - S), (0, 0)))
    num_tiles = S_pad // tile_s
    tiles_per_split = num_tiles // num_splits

    flops = int(2 * B * S_pad * D2 * H        # enc projection (dominant)
                + 2 * B * H * H               # prev projection
                + 2 * B * S_pad * H           # scoring
                + 2 * B * S_pad * D2)         # context reduction
    transcendentals = int(B * S_pad * H + B * S_pad)
    bytes_accessed = int(enc_h.dtype.itemsize * B * S_pad * D2
                         + 4 * (B * H + D2 * H + H * H + 3 * H + num_splits * B * D2))

    def _run(single_buffer_invariants):
        def _inv_spec(shape):
            idx = lambda c, t, _n=len(shape): (0,) * _n
            if single_buffer_invariants:
                return pl.BlockSpec(shape, idx, pipeline_mode=pl.Buffered(1))
            return pl.BlockSpec(shape, idx)

        grid_spec = pltpu.PrefetchScalarGridSpec(
            num_scalar_prefetch=0,
            grid=(num_splits, tiles_per_split),
            in_specs=[
                # Streamed enc_h tile: each core covers its own contiguous range.
                pl.BlockSpec((B, tile_s, D2),
                             lambda c, t: (0, c * tiles_per_split + t, 0)),
                _inv_spec((B, H)),            # prev_s
                _inv_spec((D2, H)),           # w_enc^T
                _inv_spec((1, H)),            # b_enc
                _inv_spec((H, H)),            # w_prev^T
                _inv_spec((1, H)),            # b_prev
                _inv_spec((1, 1, H)),         # w_lin
            ],
            # Per-core resident partial-context slab; summed in the wrapper.
            out_specs=pl.BlockSpec((None, B, D2), lambda c, t: (c, 0, 0)),
            scratch_shapes=[pltpu.VMEM((B, 1, H), jnp.float32)],   # prev_proj (+b_enc)
        )

        return pl.pallas_call(
            functools.partial(attention_kernel, tanh_dtype=tanh_dtype),
            out_shape=jax.ShapeDtypeStruct((num_splits, B, D2), jnp.float32),
            grid_spec=grid_spec,
            compiler_params=pltpu.CompilerParams(
                dimension_semantics=("parallel", "arbitrary"),
                vmem_limit_bytes=_VMEM_BUDGET_BYTES.get(gen, 12 << 20)),
            cost_estimate=pl.CostEstimate(
                flops=flops, transcendentals=transcendentals,
                bytes_accessed=bytes_accessed),
        )(enc_h, prev_s, w_enc_t, b_enc, w_prev_t, b_prev, w_lin)

    if _HAS_PIPELINE_MODE:
        try:
            return jnp.sum(_run(True), axis=0)
        except Exception:
            pass   # fall back to default double-buffered invariants
    return jnp.sum(_run(False), axis=0)


def attention_ref(enc_h, prev_s, params):
    """Pure-JAX reference mirroring the PyTorch forward exactly."""
    w_enc, b_enc, w_prev, b_prev, w_lin, b_lin = params
    enc_proj = enc_h @ w_enc.T + b_enc                 # (B, S, H)
    prev_proj = prev_s @ w_prev.T + b_prev             # (B, H)
    h = jnp.tanh(enc_proj + prev_proj[:, None, :])     # (B, S, H)
    scores = h @ w_lin.T + b_lin                       # (B, S, 1)
    alpha = jax.nn.softmax(scores, axis=0)             # legacy implicit dim=0 (batch)
    return jnp.sum(alpha * enc_h, axis=1)              # (B, 2H)


if __name__ == "__main__":
    B, S, H = 2, 8, 32
    key = jax.random.PRNGKey(0)
    ks = jax.random.split(key, 8)

    def uni(k, shape, fan_in):
        bound = 1.0 / (fan_in ** 0.5)
        return jax.random.uniform(k, shape, jnp.float32, -bound, bound)

    # Deterministic params, PyTorch nn.Linear layouts: weight (out, in), bias (out,)
    w_enc = uni(ks[0], (H, 2 * H), 2 * H)
    b_enc = uni(ks[1], (H,), 2 * H)
    w_prev = uni(ks[2], (H, H), H)
    b_prev = uni(ks[3], (H,), H)
    w_lin = uni(ks[4], (1, H), H)
    b_lin = uni(ks[5], (1,), H)
    params = (w_enc, b_enc, w_prev, b_prev, w_lin, b_lin)

    enc_h = jax.random.normal(ks[6], (B, S, 2 * H), jnp.float32)
    prev_s = jax.random.normal(ks[7], (B, H), jnp.float32)

    prepared = prepare_params(params)      # one-time weight transpose / reshape
    ctx = jax.block_until_ready(attention_pallas(enc_h, prev_s, prepared))
    ref = attention_ref(enc_h, prev_s, params)

    assert ctx.shape == (B, 2 * H)
    max_diff = float(jnp.max(jnp.abs(ctx - ref)))
    assert bool(jnp.allclose(ctx, ref, atol=5e-3, rtol=5e-3)), f"max abs diff {max_diff}"
    print("KERNEL_OK")
</pallas_src>

<mosaic_0001>
module attributes {stable_mosaic.version = 11 : i64} {
  func.func @attention_kernel(%arg0: i32, %arg1: i32, %arg2: memref<2x8x64xf32, #tpu.memory_space<vmem>>, %arg3: memref<2x32xf32, #tpu.memory_space<vmem>>, %arg4: memref<64x32xf32, #tpu.memory_space<vmem>>, %arg5: memref<1x32xf32, #tpu.memory_space<vmem>>, %arg6: memref<32x32xf32, #tpu.memory_space<vmem>>, %arg7: memref<1x32xf32, #tpu.memory_space<vmem>>, %arg8: memref<1x1x32xf32, #tpu.memory_space<vmem>>, %arg9: memref<1x2x64xf32, #tpu.memory_space<vmem>>, %arg10: memref<2x1x32xf32, #tpu.memory_space<vmem>>) attributes {dimension_semantics = [#tpu.dimension_semantics<parallel>, #tpu.dimension_semantics<arbitrary>], iteration_bounds = array<i64: 1, 1>, scalar_prefetch = 0 : i64, scratch_operands = 1 : i64, tpu.core_type = #tpu.core_type<tc>, window_params = [{transform_indices = @transform_0, window_bounds = array<i64: 2, 8, 64>}, {pipeline_mode = #tpu.pipeline_mode<synchronous>, transform_indices = @transform_1, window_bounds = array<i64: 2, 32>}, {pipeline_mode = #tpu.pipeline_mode<synchronous>, transform_indices = @transform_2, window_bounds = array<i64: 64, 32>}, {pipeline_mode = #tpu.pipeline_mode<synchronous>, transform_indices = @transform_3, window_bounds = array<i64: 1, 32>}, {pipeline_mode = #tpu.pipeline_mode<synchronous>, transform_indices = @transform_4, window_bounds = array<i64: 32, 32>}, {pipeline_mode = #tpu.pipeline_mode<synchronous>, transform_indices = @transform_5, window_bounds = array<i64: 1, 32>}, {pipeline_mode = #tpu.pipeline_mode<synchronous>, transform_indices = @transform_6, window_bounds = array<i64: 1, 1, 32>}, {transform_indices = @transform_7, window_bounds = array<i64: 1, 2, 64>}]} {
    %c0_i32 = arith.constant 0 : i32
    %0 = arith.cmpi eq, %arg1, %c0_i32 : i32
    %1 = arith.extui %0 : i1 to i32
    %c0_i32_0 = arith.constant 0 : i32
    %2 = arith.cmpi ne, %1, %c0_i32_0 : i32
    scf.if %2 {
      %c0_21 = arith.constant 0 : index
      %c0_22 = arith.constant 0 : index
      %35 = vector.load %arg3[%c0_21, %c0_22] : memref<2x32xf32, #tpu.memory_space<vmem>>, vector<2x32xf32>
      %c0_23 = arith.constant 0 : index
      %c0_24 = arith.constant 0 : index
      %36 = vector.load %arg6[%c0_23, %c0_24] : memref<32x32xf32, #tpu.memory_space<vmem>>, vector<32x32xf32>
      %cst_25 = arith.constant dense<0.000000e+00> : vector<2x32xf32>
      %37 = tpu.matmul %35, %36, %cst_25 {dimension_numbers = #tpu.dot_dimension_numbers<[1], [0], [0], [1], [0, 0, 1, 1], [], []>} : vector<2x32xf32>, vector<32x32xf32>, vector<2x32xf32> -> vector<2x32xf32>
      %c0_26 = arith.constant 0 : index
      %c0_27 = arith.constant 0 : index
      %38 = vector.load %arg7[%c0_26, %c0_27] : memref<1x32xf32, #tpu.memory_space<vmem>>, vector<1x32xf32>
      %39 = vector.broadcast %38 : vector<1x32xf32> to vector<2x32xf32>
      %40 = arith.addf %37, %39 : vector<2x32xf32>
      %c0_28 = arith.constant 0 : index
      %c0_29 = arith.constant 0 : index
      %41 = vector.load %arg5[%c0_28, %c0_29] : memref<1x32xf32, #tpu.memory_space<vmem>>, vector<1x32xf32>
      %42 = vector.broadcast %41 : vector<1x32xf32> to vector<2x32xf32>
      %43 = arith.addf %40, %42 : vector<2x32xf32>
      %44 = vector.shape_cast %43 : vector<2x32xf32> to vector<2x1x32xf32>
      %c0_30 = arith.constant 0 : index
      %c0_31 = arith.constant 0 : index
      %c0_32 = arith.constant 0 : index
      %45 = vector.load %arg10[%c0_30, %c0_31, %c0_32] : memref<2x1x32xf32, #tpu.memory_space<vmem>>, vector<2x1x32xf32>
      tpu.vector_store %arg10[%c0_30, %c0_31, %c0_32], %44 {strides = array<i32>} : memref<2x1x32xf32, #tpu.memory_space<vmem>>, vector<2x1x32xf32>,
      %cst_33 = arith.constant 0.000000e+00 : f32
      %46 = vector.broadcast %cst_33 : f32 to vector<2x64xf32>
      %c0_34 = arith.constant 0 : index
      %c0_35 = arith.constant 0 : index
      %c0_36 = arith.constant 0 : index
      %47 = vector.load %arg9[%c0_34, %c0_35, %c0_36] : memref<1x2x64xf32, #tpu.memory_space<vmem>>, vector<1x2x64xf32>
      %48 = vector.shape_cast %47 : vector<1x2x64xf32> to vector<2x64xf32>
      %49 = vector.shape_cast %46 : vector<2x64xf32> to vector<1x2x64xf32>
      tpu.vector_store %arg9[%c0_34, %c0_35, %c0_36], %49 {strides = array<i32>} : memref<1x2x64xf32, #tpu.memory_space<vmem>>, vector<1x2x64xf32>,
    } else {
    }
    %c0 = arith.constant 0 : index
    %c0_1 = arith.constant 0 : index
    %c0_2 = arith.constant 0 : index
    %3 = vector.load %arg2[%c0, %c0_1, %c0_2] : memref<2x8x64xf32, #tpu.memory_space<vmem>>, vector<2x8x64xf32>
    %4 = vector.shape_cast %3 : vector<2x8x64xf32> to vector<16x64xf32>
    %c0_3 = arith.constant 0 : index
    %c0_4 = arith.constant 0 : index
    %5 = vector.load %arg4[%c0_3, %c0_4] : memref<64x32xf32, #tpu.memory_space<vmem>>, vector<64x32xf32>
    %cst = arith.constant dense<0.000000e+00> : vector<16x32xf32>
    %6 = tpu.matmul %4, %5, %cst {dimension_numbers = #tpu.dot_dimension_numbers<[1], [0], [0], [1], [0, 0, 1, 1], [], []>} : vector<16x64xf32>, vector<64x32xf32>, vector<16x32xf32> -> vector<16x32xf32>
    %7 = vector.shape_cast %6 : vector<16x32xf32> to vector<2x8x32xf32>
    %c0_5 = arith.constant 0 : index
    %c0_6 = arith.constant 0 : index
    %c0_7 = arith.constant 0 : index
    %8 = vector.load %arg10[%c0_5, %c0_6, %c0_7] : memref<2x1x32xf32, #tpu.memory_space<vmem>>, vector<2x1x32xf32>
    %9 = vector.broadcast %8 : vector<2x1x32xf32> to vector<2x8x32xf32>
    %10 = arith.addf %7, %9 : vector<2x8x32xf32>
    %11 = math.tanh %10 : vector<2x8x32xf32>
    %c0_8 = arith.constant 0 : index
    %c0_9 = arith.constant 0 : index
    %c0_10 = arith.constant 0 : index
    %12 = vector.load %arg8[%c0_8, %c0_9, %c0_10] : memref<1x1x32xf32, #tpu.memory_space<vmem>>, vector<1x1x32xf32>
    %13 = vector.broadcast %12 : vector<1x1x32xf32> to vector<2x8x32xf32>
    %14 = arith.mulf %11, %13 : vector<2x8x32xf32>
    %cst_11 = arith.constant dense<0.000000e+00> : vector<2x8xf32>
    %15 = vector.multi_reduction <add>, %14, %cst_11 [2] : vector<2x8x32xf32> to vector<2x8xf32>
    %16 = vector.shape_cast %15 : vector<2x8xf32> to vector<2x8x1xf32>
    %cst_12 = arith.constant dense<0xFF800000> : vector<8x1xf32>
    %17 = vector.multi_reduction <maximumf>, %16, %cst_12 [0] : vector<2x8x1xf32> to vector<8x1xf32>
    %18 = vector.shape_cast %17 : vector<8x1xf32> to vector<1x8x1xf32>
    %19 = vector.broadcast %18 : vector<1x8x1xf32> to vector<2x8x1xf32>
    %20 = arith.subf %16, %19 : vector<2x8x1xf32>
    %21 = math.exp %20 : vector<2x8x1xf32>
    %cst_13 = arith.constant dense<0.000000e+00> : vector<8x1xf32>
    %22 = vector.multi_reduction <add>, %21, %cst_13 [0] : vector<2x8x1xf32> to vector<8x1xf32>
    %23 = vector.shape_cast %22 : vector<8x1xf32> to vector<1x8x1xf32>
    %24 = vector.broadcast %23 : vector<1x8x1xf32> to vector<2x8x1xf32>
    %25 = arith.divf %21, %24 : vector<2x8x1xf32>
    %c0_14 = arith.constant 0 : index
    %c0_15 = arith.constant 0 : index
    %c0_16 = arith.constant 0 : index
    %26 = vector.load %arg9[%c0_14, %c0_15, %c0_16] : memref<1x2x64xf32, #tpu.memory_space<vmem>>, vector<1x2x64xf32>
    %27 = vector.shape_cast %26 : vector<1x2x64xf32> to vector<2x64xf32>
    %28 = vector.broadcast %25 : vector<2x8x1xf32> to vector<2x8x64xf32>
    %29 = arith.mulf %28, %3 : vector<2x8x64xf32>
    %cst_17 = arith.constant dense<0.000000e+00> : vector<2x64xf32>
    %30 = vector.multi_reduction <add>, %29, %cst_17 [1] : vector<2x8x64xf32> to vector<2x64xf32>
    %31 = arith.addf %27, %30 : vector<2x64xf32>
    %c0_18 = arith.constant 0 : index
    %c0_19 = arith.constant 0 : index
    %c0_20 = arith.constant 0 : index
    %32 = vector.load %arg9[%c0_18, %c0_19, %c0_20] : memref<1x2x64xf32, #tpu.memory_space<vmem>>, vector<1x2x64xf32>
    %33 = vector.shape_cast %32 : vector<1x2x64xf32> to vector<2x64xf32>
    %34 = vector.shape_cast %31 : vector<2x64xf32> to vector<1x2x64xf32>
    tpu.vector_store %arg9[%c0_18, %c0_19, %c0_20], %34 {strides = array<i32>} : memref<1x2x64xf32, #tpu.memory_space<vmem>>, vector<1x2x64xf32>,
    return
  }
  func.func @transform_0(%arg0: i32, %arg1: i32) -> (i32, i32, i32) {
    %c1_i32 = arith.constant 1 : i32
    %0 = arith.muli %arg0, %c1_i32 : i32
    %1 = arith.addi %0, %arg1 : i32
    %c0_i32 = arith.constant 0 : i32
    %c0_i32_0 = arith.constant 0 : i32
    %c0_i32_1 = arith.constant 0 : i32
    return %c0_i32, %1, %c0_i32_0 : i32, i32, i32
  }
  func.func @transform_1(%arg0: i32, %arg1: i32) -> (i32, i32) {
    %c0_i32 = arith.constant 0 : i32
    %c0_i32_0 = arith.constant 0 : i32
    %c0_i32_1 = arith.constant 0 : i32
    return %c0_i32, %c0_i32_0 : i32, i32
  }
  func.func @transform_2(%arg0: i32, %arg1: i32) -> (i32, i32) {
    %c0_i32 = arith.constant 0 : i32
    %c0_i32_0 = arith.constant 0 : i32
    %c0_i32_1 = arith.constant 0 : i32
    return %c0_i32, %c0_i32_0 : i32, i32
  }
  func.func @transform_3(%arg0: i32, %arg1: i32) -> (i32, i32) {
    %c0_i32 = arith.constant 0 : i32
    %c0_i32_0 = arith.constant 0 : i32
    %c0_i32_1 = arith.constant 0 : i32
    return %c0_i32, %c0_i32_0 : i32, i32
  }
  func.func @transform_4(%arg0: i32, %arg1: i32) -> (i32, i32) {
    %c0_i32 = arith.constant 0 : i32
    %c0_i32_0 = arith.constant 0 : i32
    %c0_i32_1 = arith.constant 0 : i32
    return %c0_i32, %c0_i32_0 : i32, i32
  }
  func.func @transform_5(%arg0: i32, %arg1: i32) -> (i32, i32) {
    %c0_i32 = arith.constant 0 : i32
    %c0_i32_0 = arith.constant 0 : i32
    %c0_i32_1 = arith.constant 0 : i32
    return %c0_i32, %c0_i32_0 : i32, i32
  }
  func.func @transform_6(%arg0: i32, %arg1: i32) -> (i32, i32, i32) {
    %c0_i32 = arith.constant 0 : i32
    %c0_i32_0 = arith.constant 0 : i32
    %c0_i32_1 = arith.constant 0 : i32
    %c0_i32_2 = arith.constant 0 : i32
    return %c0_i32, %c0_i32_0, %c0_i32_1 : i32, i32, i32
  }
  func.func @transform_7(%arg0: i32, %arg1: i32) -> (i32, i32, i32) {
    %c0_i32 = arith.constant 0 : i32
    %c0_i32_0 = arith.constant 0 : i32
    %c0_i32_1 = arith.constant 0 : i32
    return %arg0, %c0_i32, %c0_i32_0 : i32, i32, i32
  }
}

module attributes {stable_mosaic.version = 11 : i64} {
  func.func @attention_kernel(%arg0: i32, %arg1: i32, %arg2: memref<2x8x64xf32, #tpu.memory_space<vmem>>, %arg3: memref<2x32xf32, #tpu.memory_space<vmem>>, %arg4: memref<64x32xf32, #tpu.memory_space<vmem>>, %arg5: memref<1x32xf32, #tpu.memory_space<vmem>>, %arg6: memref<32x32xf32, #tpu.memory_space<vmem>>, %arg7: memref<1x32xf32, #tpu.memory_space<vmem>>, %arg8: memref<1x1x32xf32, #tpu.memory_space<vmem>>, %arg9: memref<1x2x64xf32, #tpu.memory_space<vmem>>, %arg10: memref<2x1x32xf32, #tpu.memory_space<vmem>>) attributes {dimension_semantics = [#tpu.dimension_semantics<parallel>, #tpu.dimension_semantics<arbitrary>], iteration_bounds = array<i64: 1, 1>, scalar_prefetch = 0 : i64, scratch_operands = 1 : i64, tpu.core_type = #tpu.core_type<tc>, window_params = [{transform_indices = @transform_0, window_bounds = array<i64: 2, 8, 64>}, {pipeline_mode = #tpu.pipeline_mode<synchronous>, transform_indices = @transform_1, window_bounds = array<i64: 2, 32>}, {pipeline_mode = #tpu.pipeline_mode<synchronous>, transform_indices = @transform_2, window_bounds = array<i64: 64, 32>}, {pipeline_mode = #tpu.pipeline_mode<synchronous>, transform_indices = @transform_3, window_bounds = array<i64: 1, 32>}, {pipeline_mode = #tpu.pipeline_mode<synchronous>, transform_indices = @transform_4, window_bounds = array<i64: 32, 32>}, {pipeline_mode = #tpu.pipeline_mode<synchronous>, transform_indices = @transform_5, window_bounds = array<i64: 1, 32>}, {pipeline_mode = #tpu.pipeline_mode<synchronous>, transform_indices = @transform_6, window_bounds = array<i64: 1, 1, 32>}, {transform_indices = @transform_7, window_bounds = array<i64: 1, 2, 64>}]} {
    %c0_i32 = arith.constant 0 : i32
    %0 = arith.cmpi eq, %arg1, %c0_i32 : i32
    %1 = arith.extui %0 : i1 to i32
    %c0_i32_0 = arith.constant 0 : i32
    %2 = arith.cmpi ne, %1, %c0_i32_0 : i32
    scf.if %2 {
      %c0_21 = arith.constant 0 : index
      %c0_22 = arith.constant 0 : index
      %35 = vector.load %arg3[%c0_21, %c0_22] : memref<2x32xf32, #tpu.memory_space<vmem>>, vector<2x32xf32>
      %c0_23 = arith.constant 0 : index
      %c0_24 = arith.constant 0 : index
      %36 = vector.load %arg6[%c0_23, %c0_24] : memref<32x32xf32, #tpu.memory_space<vmem>>, vector<32x32xf32>
      %cst_25 = arith.constant dense<0.000000e+00> : vector<2x32xf32>
      %37 = tpu.matmul %35, %36, %cst_25 {dimension_numbers = #tpu.dot_dimension_numbers<[1], [0], [0], [1], [0, 0, 1, 1], [], []>} : vector<2x32xf32>, vector<32x32xf32>, vector<2x32xf32> -> vector<2x32xf32>
      %c0_26 = arith.constant 0 : index
      %c0_27 = arith.constant 0 : index
      %38 = vector.load %arg7[%c0_26, %c0_27] : memref<1x32xf32, #tpu.memory_space<vmem>>, vector<1x32xf32>
      %39 = vector.broadcast %38 : vector<1x32xf32> to vector<2x32xf32>
      %40 = arith.addf %37, %39 : vector<2x32xf32>
      %c0_28 = arith.constant 0 : index
      %c0_29 = arith.constant 0 : index
      %41 = vector.load %arg5[%c0_28, %c0_29] : memref<1x32xf32, #tpu.memory_space<vmem>>, vector<1x32xf32>
      %42 = vector.broadcast %41 : vector<1x32xf32> to vector<2x32xf32>
      %43 = arith.addf %40, %42 : vector<2x32xf32>
      %44 = vector.shape_cast %43 : vector<2x32xf32> to vector<2x1x32xf32>
      %c0_30 = arith.constant 0 : index
      %c0_31 = arith.constant 0 : index
      %c0_32 = arith.constant 0 : index
      %45 = vector.load %arg10[%c0_30, %c0_31, %c0_32] : memref<2x1x32xf32, #tpu.memory_space<vmem>>, vector<2x1x32xf32>
      tpu.vector_store %arg10[%c0_30, %c0_31, %c0_32], %44 {strides = array<i32>} : memref<2x1x32xf32, #tpu.memory_space<vmem>>, vector<2x1x32xf32>,
      %cst_33 = arith.constant 0.000000e+00 : f32
      %46 = vector.broadcast %cst_33 : f32 to vector<2x64xf32>
      %c0_34 = arith.constant 0 : index
      %c0_35 = arith.constant 0 : index
      %c0_36 = arith.constant 0 : index
      %47 = vector.load %arg9[%c0_34, %c0_35, %c0_36] : memref<1x2x64xf32, #tpu.memory_space<vmem>>, vector<1x2x64xf32>
      %48 = vector.shape_cast %47 : vector<1x2x64xf32> to vector<2x64xf32>
      %49 = vector.shape_cast %46 : vector<2x64xf32> to vector<1x2x64xf32>
      tpu.vector_store %arg9[%c0_34, %c0_35, %c0_36], %49 {strides = array<i32>} : memref<1x2x64xf32, #tpu.memory_space<vmem>>, vector<1x2x64xf32>,
    } else {
    }
    %c0 = arith.constant 0 : index
    %c0_1 = arith.constant 0 : index
    %c0_2 = arith.constant 0 : index
    %3 = vector.load %arg2[%c0, %c0_1, %c0_2] : memref<2x8x64xf32, #tpu.memory_space<vmem>>, vector<2x8x64xf32>
    %4 = vector.shape_cast %3 : vector<2x8x64xf32> to vector<16x64xf32>
    %c0_3 = arith.constant 0 : index
    %c0_4 = arith.constant 0 : index
    %5 = vector.load %arg4[%c0_3, %c0_4] : memref<64x32xf32, #tpu.memory_space<vmem>>, vector<64x32xf32>
    %cst = arith.constant dense<0.000000e+00> : vector<16x32xf32>
    %6 = tpu.matmul %4, %5, %cst {dimension_numbers = #tpu.dot_dimension_numbers<[1], [0], [0], [1], [0, 0, 1, 1], [], []>} : vector<16x64xf32>, vector<64x32xf32>, vector<16x32xf32> -> vector<16x32xf32>
    %7 = vector.shape_cast %6 : vector<16x32xf32> to vector<2x8x32xf32>
    %c0_5 = arith.constant 0 : index
    %c0_6 = arith.constant 0 : index
    %c0_7 = arith.constant 0 : index
    %8 = vector.load %arg10[%c0_5, %c0_6, %c0_7] : memref<2x1x32xf32, #tpu.memory_space<vmem>>, vector<2x1x32xf32>
    %9 = vector.broadcast %8 : vector<2x1x32xf32> to vector<2x8x32xf32>
    %10 = arith.addf %7, %9 : vector<2x8x32xf32>
    %11 = math.tanh %10 : vector<2x8x32xf32>
    %c0_8 = arith.constant 0 : index
    %c0_9 = arith.constant 0 : index
    %c0_10 = arith.constant 0 : index
    %12 = vector.load %arg8[%c0_8, %c0_9, %c0_10] : memref<1x1x32xf32, #tpu.memory_space<vmem>>, vector<1x1x32xf32>
    %13 = vector.broadcast %12 : vector<1x1x32xf32> to vector<2x8x32xf32>
    %14 = arith.mulf %11, %13 : vector<2x8x32xf32>
    %cst_11 = arith.constant dense<0.000000e+00> : vector<2x8xf32>
    %15 = vector.multi_reduction <add>, %14, %cst_11 [2] : vector<2x8x32xf32> to vector<2x8xf32>
    %16 = vector.shape_cast %15 : vector<2x8xf32> to vector<2x8x1xf32>
    %cst_12 = arith.constant dense<0xFF800000> : vector<8x1xf32>
    %17 = vector.multi_reduction <maximumf>, %16, %cst_12 [0] : vector<2x8x1xf32> to vector<8x1xf32>
    %18 = vector.shape_cast %17 : vector<8x1xf32> to vector<1x8x1xf32>
    %19 = vector.broadcast %18 : vector<1x8x1xf32> to vector<2x8x1xf32>
    %20 = arith.subf %16, %19 : vector<2x8x1xf32>
    %21 = math.exp %20 : vector<2x8x1xf32>
    %cst_13 = arith.constant dense<0.000000e+00> : vector<8x1xf32>
    %22 = vector.multi_reduction <add>, %21, %cst_13 [0] : vector<2x8x1xf32> to vector<8x1xf32>
    %23 = vector.shape_cast %22 : vector<8x1xf32> to vector<1x8x1xf32>
    %24 = vector.broadcast %23 : vector<1x8x1xf32> to vector<2x8x1xf32>
    %25 = arith.divf %21, %24 : vector<2x8x1xf32>
    %c0_14 = arith.constant 0 : index
    %c0_15 = arith.constant 0 : index
    %c0_16 = arith.constant 0 : index
    %26 = vector.load %arg9[%c0_14, %c0_15, %c0_16] : memref<1x2x64xf32, #tpu.memory_space<vmem>>, vector<1x2x64xf32>
    %27 = vector.shape_cast %26 : vector<1x2x64xf32> to vector<2x64xf32>
    %28 = vector.broadcast %25 : vector<2x8x1xf32> to vector<2x8x64xf32>
    %29 = arith.mulf %28, %3 : vector<2x8x64xf32>
    %cst_17 = arith.constant dense<0.000000e+00> : vector<2x64xf32>
    %30 = vector.multi_reduction <add>, %29, %cst_17 [1] : vector<2x8x64xf32> to vector<2x64xf32>
    %31 = arith.addf %27, %30 : vector<2x64xf32>
    %c0_18 = arith.constant 0 : index
    %c0_19 = arith.constant 0 : index
    %c0_20 = arith.constant 0 : index
    %32 = vector.load %arg9[%c0_18, %c0_19, %c0_20] : memref<1x2x64xf32, #tpu.memory_space<vmem>>, vector<1x2x64xf32>
    %33 = vector.shape_cast %32 : vector<1x2x64xf32> to vector<2x64xf32>
    %34 = vector.shape_cast %31 : vector<2x64xf32> to vector<1x2x64xf32>
    tpu.vector_store %arg9[%c0_18, %c0_19, %c0_20], %34 {strides = array<i32>} : memref<1x2x64xf32, #tpu.memory_space<vmem>>, vector<1x2x64xf32>,
    return
  }
  func.func @transform_0(%arg0: i32, %arg1: i32) -> (i32, i32, i32) {
    %c1_i32 = arith.constant 1 : i32
    %0 = arith.muli %arg0, %c1_i32 : i32
    %1 = arith.addi %0, %arg1 : i32
    %c0_i32 = arith.constant 0 : i32
    %c0_i32_0 = arith.constant 0 : i32
    %c0_i32_1 = arith.constant 0 : i32
    return %c0_i32, %1, %c0_i32_0 : i32, i32, i32
  }
  func.func @transform_1(%arg0: i32, %arg1: i32) -> (i32, i32) {
    %c0_i32 = arith.constant 0 : i32
    %c0_i32_0 = arith.constant 0 : i32
    %c0_i32_1 = arith.constant 0 : i32
    return %c0_i32, %c0_i32_0 : i32, i32
  }
  func.func @transform_2(%arg0: i32, %arg1: i32) -> (i32, i32) {
    %c0_i32 = arith.constant 0 : i32
    %c0_i32_0 = arith.constant 0 : i32
    %c0_i32_1 = arith.constant 0 : i32
    return %c0_i32, %c0_i32_0 : i32, i32
  }
  func.func @transform_3(%arg0: i32, %arg1: i32) -> (i32, i32) {
    %c0_i32 = arith.constant 0 : i32
    %c0_i32_0 = arith.constant 0 : i32
    %c0_i32_1 = arith.constant 0 : i32
    return %c0_i32, %c0_i32_0 : i32, i32
  }
  func.func @transform_4(%arg0: i32, %arg1: i32) -> (i32, i32) {
    %c0_i32 = arith.constant 0 : i32
    %c0_i32_0 = arith.constant 0 : i32
    %c0_i32_1 = arith.constant 0 : i32
    return %c0_i32, %c0_i32_0 : i32, i32
  }
  func.func @transform_5(%arg0: i32, %arg1: i32) -> (i32, i32) {
    %c0_i32 = arith.constant 0 : i32
    %c0_i32_0 = arith.constant 0 : i32
    %c0_i32_1 = arith.constant 0 : i32
    return %c0_i32, %c0_i32_0 : i32, i32
  }
  func.func @transform_6(%arg0: i32, %arg1: i32) -> (i32, i32, i32) {
    %c0_i32 = arith.constant 0 : i32
    %c0_i32_0 = arith.constant 0 : i32
    %c0_i32_1 = arith.constant 0 : i32
    %c0_i32_2 = arith.constant 0 : i32
    return %c0_i32, %c0_i32_0, %c0_i32_1 : i32, i32, i32
  }
  func.func @transform_7(%arg0: i32, %arg1: i32) -> (i32, i32, i32) {
    %c0_i32 = arith.constant 0 : i32
    %c0_i32_0 = arith.constant 0 : i32
    %c0_i32_1 = arith.constant 0 : i32
    return %arg0, %c0_i32, %c0_i32_0 : i32, i32, i32
  }
}

</mosaic_0001>

<llo_original>
// kernel: tpu_custom_call.1
$region0: #{tpu_custom_call.1}
  #allocation0 [shape = 'u32[]', space=smem, size = 0x4, offset = 0x4, fixed_abs, tag = 'smem constant byte address 0x4 - core index']
  #allocation1 [shape = 'u32[144,128]{1,0:T(1,128)}', space=vmem, size = 0x12000, scoped, tag = 'internal scratch']
  #allocation2 [shape = 'f32[2,1,32]{2,1,0:T(1,128)}', space=vmem, size = 0x400, scoped, tag = 'scratch operand']
  %s0 = inlined_call_operand.vmem [shape: f32[2,8,64], index: 0, kind: input, shape index: {}]
  %s1 = inlined_call_operand.vmem [shape: f32[2,32], index: 1, kind: input, shape index: {}]
  %s2 = inlined_call_operand.vmem [shape: f32[64,32], index: 2, kind: input, shape index: {}]
  %s3 = inlined_call_operand.vmem [shape: f32[1,32], index: 3, kind: input, shape index: {}]
  %s4 = inlined_call_operand.vmem [shape: f32[32,32], index: 4, kind: input, shape index: {}]
  %s5 = inlined_call_operand.vmem [shape: f32[1,32], index: 5, kind: input, shape index: {}]
  %s6 = inlined_call_operand.vmem [shape: f32[1,1,32], index: 6, kind: input, shape index: {}]
  %s7 = inlined_call_operand.hbm [shape: f32[1,2,64], index: 7, kind: output, shape index: {}]
  %s8 = sld [smem:[#allocation0]]
  $region42: #{tpu_custom_call.1} parent=0
    _
  %s10 = ssub.s32 1, %s8
  %s11 = scalar_select 0, %s10, %s8
  $region1: #{tpu_custom_call.1} parent=0
    #allocation3 [shape = 'u8[1024]{0}', space=vmem, size = 0x400, scoped, tag = 'output window, operand 0, single buffered']
    #allocation4 [shape = 's32[1]{0}', space=sflag, size = 0x4, scoped, tag = 'scoped memory for tpu_custom_call.1']
    %12 = vsyncpa [#allocation4], 0
    // Predicated region
    $region2: #{tpu_custom_call.1} parent=1 // pred_check
      _
    $region3: #{tpu_custom_call.1} parent=1 // pred_check_branch
      %14 = sbr.rel (0) target = $region5
    $region4: #{tpu_custom_call.1} parent=1 // pred_region
      %s15 = sadd.s32 0, 0
      %p16 = scmp.lt.s32.totalorder %s15, 0
      %s17 = scalar_select %p16, %s15, 0
      %s18 = smul.addr %s17, 8
      %s19 = scalar_lea.vmem %s0, %s18
      %s20 = sadd.s32 0, 0
    $region5: #{tpu_custom_call.1} parent=1 // pred_fallthru
      _
    // Predicated region
    $region6: #{tpu_custom_call.1} parent=1 // pred_check
      _
    $region7: #{tpu_custom_call.1} parent=1 // pred_check_branch
      %22 = sbr.rel (0) target = $region9
    $region8: #{tpu_custom_call.1} parent=1 // pred_region
      _
    $region9: #{tpu_custom_call.1} parent=1 // pred_fallthru
      _
    // Predicated region
    $region10: #{tpu_custom_call.1} parent=1 // pred_check
      _
    $region11: #{tpu_custom_call.1} parent=1 // pred_check_branch
      %24 = sbr.rel (0) target = $region13
    $region12: #{tpu_custom_call.1} parent=1 // pred_region
      _
    $region13: #{tpu_custom_call.1} parent=1 // pred_fallthru
      _
    // Predicated region
    $region14: #{tpu_custom_call.1} parent=1 // pred_check
      _
    $region15: #{tpu_custom_call.1} parent=1 // pred_check_branch
      %26 = sbr.rel (0) target = $region17
    $region16: #{tpu_custom_call.1} parent=1 // pred_region
      _
    $region17: #{tpu_custom_call.1} parent=1 // pred_fallthru
      _
    // Predicated region
    $region18: #{tpu_custom_call.1} parent=1 // pred_check
      _
    $region19: #{tpu_custom_call.1} parent=1 // pred_check_branch
      %28 = sbr.rel (0) target = $region21
    $region20: #{tpu_custom_call.1} parent=1 // pred_region
      _
    $region21: #{tpu_custom_call.1} parent=1 // pred_fallthru
      _
    // Predicated region
    $region22: #{tpu_custom_call.1} parent=1 // pred_check
      _
    $region23: #{tpu_custom_call.1} parent=1 // pred_check_branch
      %30 = sbr.rel (0) target = $region25
    $region24: #{tpu_custom_call.1} parent=1 // pred_region
      _
    $region25: #{tpu_custom_call.1} parent=1 // pred_fallthru
      _
    // Predicated region
    $region26: #{tpu_custom_call.1} parent=1 // pred_check
      _
    $region27: #{tpu_custom_call.1} parent=1 // pred_check_branch
      %32 = sbr.rel (0) target = $region29
    $region28: #{tpu_custom_call.1} parent=1 // pred_region
      _
    $region29: #{tpu_custom_call.1} parent=1 // pred_fallthru
      _
    %s33 = sadd.s32 0, 0
    %p34 = scmp.lt.s32.totalorder %s33, 0
    %s35 = scalar_select %p34, %s33, 0
    %s36 = smul.addr %s35, 8
    %s37 = scalar_lea.vmem %s0, %s36
    %s38 = sadd.s32 0, 0
    %p39 = scmp.lt.s32.totalorder %s38, 0
    %s40 = scalar_select %p39, %s38, 0
    %s41 = smul.addr %s40, 8
    %s42 = scalar_lea.vmem %s0, %s41
    %s43 = sadd.s32 0, 0
    %p44 = scmp.eq.s32.totalorder 0, 0
    // Predicated region
    $region30: #{tpu_custom_call.1} parent=1 // pred_check
      %p45 = pneg %p44
    $region31: #{tpu_custom_call.1} parent=1 // pred_check_branch
      %47 = sbr.rel (%p45) target = $region33
    $region32: #{tpu_custom_call.1} parent=1 // pred_region
      %v48 = vld [vmem:[%s1] sm:$0x3]
      %v49 = vld [vmem:[%s4] sm:$0xff]
      %v50 = vld [vmem:[%s4 + $0x8] sm:$0xff]
      %v51 = vld [vmem:[%s4 + $0x10] sm:$0xff]
      %v52 = vld [vmem:[%s4 + $0x18] sm:$0xff]
      %v53 = vld [vmem:[%s5] sm:$0x1]
      %v55 = vlaneseq
      %v56 = vshrl.u32 %v55, 7
      %v57 = vsub.s32 0, %v56
      %v58 = vrot.slane %v53, %v57
      %vm60 = vcmask 261120
      %v62 = vsel %vm60, %v48, 0
      %64 = vmatprep.subr.mxu0 0.0
      %65 = vmatpush1.msra.mxu0 %v49
      %66 = vmatprep.subr.mxu0 0.0
      %67 = vmatpush1.msra.mxu0 %v50
      %68 = vmatprep.subr.mxu0 0.0
      %69 = vmatpush1.msra.mxu0 %v51
      %70 = vmatprep.subr.mxu0 0.0
      %71 = vmatpush1.msra.mxu0 %v52
      %72 = vmatprep.subr.mxu0 0.0
      %73 = vmatpush1.msra.mxu0 0.0
      %74 = vmatprep.subr.mxu0 0.0
      %75 = vmatpush1.msra.mxu0 0.0
      %76 = vmatprep.subr.mxu0 0.0
      %77 = vmatpush1.msra.mxu0 0.0
      %78 = vmatprep.subr.mxu0 0.0
      %79 = vmatpush1.msra.mxu0 0.0
      %80 = vmatprep.subr.mxu0 0.0
      %81 = vmatpush1.msra.mxu0 0.0
      %82 = vmatprep.subr.mxu0 0.0
      %83 = vmatpush1.msra.mxu0 0.0
      %84 = vmatprep.subr.mxu0 0.0
      %85 = vmatpush1.msra.mxu0 0.0
      %86 = vmatprep.subr.mxu0 0.0
      %87 = vmatpush1.msra.mxu0 0.0
      %88 = vmatprep.subr.mxu0 0.0
      %89 = vmatpush1.msra.mxu0 0.0
      %90 = vmatprep.subr.mxu0 0.0
      %91 = vmatpush1.msra.mxu0 0.0
      %92 = vmatprep.subr.mxu0 0.0
      %93 = vmatpush1.msra.mxu0 0.0
      %94 = vmatprep.subr.mxu0 0.0
      %95 = vmatpush1.msra.mxu0 0.0
      %96 = vmatprep.subr.mxu0 0.0
      %97 = vmatpush1.msra.mxu0 0.0
      %98 = vmatprep.subr.mxu0 0.0
      %99 = vmatpush1.msra.mxu0 0.0
      %100 = vmatprep.subr.mxu0 0.0
      %101 = vmatpush1.msra.mxu0 0.0
      %102 = vmatprep.subr.mxu0 0.0
      %103 = vmatpush1.msra.mxu0 0.0
      %104 = vmatprep.subr.mxu0 0.0
      %105 = vmatpush1.msra.mxu0 0.0
      %106 = vmatprep.subr.mxu0 0.0
      %107 = vmatpush1.msra.mxu0 0.0
      %108 = vmatprep.subr.mxu0 0.0
      %109 = vmatpush1.msra.mxu0 0.0
      %110 = vmatprep.subr.mxu0 0.0
      %111 = vmatpush1.msra.mxu0 0.0
      %112 = vmatprep.subr.mxu0 0.0
      %113 = vmatpush1.msra.mxu0 0.0
      %114 = vmatprep.subr.mxu0 0.0
      %115 = vmatpush1.msra.mxu0 0.0
      %116 = vmatprep.subr.mxu0 0.0
      %117 = vmatpush1.msra.mxu0 0.0
      %118 = vmatprep.subr.mxu0 0.0
      %119 = vmatpush1.msra.mxu0 0.0
      %120 = vmatprep.subr.mxu0 0.0
      %121 = vmatpush1.msra.mxu0 0.0
      %122 = vmatprep.subr.mxu0 0.0
      %123 = vmatpush1.msra.mxu0 0.0
      %124 = vmatprep.subr.mxu0 0.0
      %125 = vmatpush1.msra.mxu0 0.0
      %126 = vmatprep.subr.mxu0 0.0
      %127 = vmatpush1.msra.mxu0 0.0
      %128 = vmatprep.mubr.f32.mxu0 0.0
      %129 = vmatmul.mubr.f32.gmra.mrb[0].mxu0 %v62
      %v130 = vpop.f32.mrb[0].mxu0
      %v131 = vadd.f32 %v58, %v130
      %v132 = vpop.f32.mrb[0].mxu0
      %133 = vdwg.mxu0
      %v134 = vld [vmem:[%s3] sm:$0x1]
      %v136 = vlaneseq
      %v137 = vshrl.u32 %v136, 7
      %v138 = vsub.s32 0, %v137
      %v139 = vrot.slane %v134, %v138
      %v141 = vadd.f32 %v131, %v139
      %v144 = vunpack.c.l.s4 1966171168
      %v145 = vunpack.c.0.s8 %v144
      %v146 = vlaneseq
      %v147 = vshrl.u32 %v146, 7
      %v148 = vsub.s32 %v145, %v147
      %v149 = vrot.slane %v141, %v148
      %v150 = vcombine.high %v149, %v149
      %v152 = vunpack.c.l.s4 1966171168
      %v153 = vunpack.c.0.s8 %v152
      %v154 = vlaneseq
      %v155 = vshrl.u32 %v154, 7
      %v156 = vsub.s32 %v153, %v155
      %v157 = vrot.slane %v149, %v156
      %v159 = vunpack.c.l.s4 1966171168
      %v160 = vunpack.c.0.s8 %v159
      %v161 = vlaneseq
      %v162 = vshrl.u32 %v161, 7
      %v163 = vsub.s32 %v160, %v162
      %v164 = vrot.slane %v150, %v163
      %vm167 = vcmask 253952
      %168 = vst.msk [vmem:[#allocation2] sm:$0x1] %vm167, %v157
      %169 = vst.msk [vmem:[#allocation2 + $0x1] sm:$0x1] %vm167, %v164
      %vm170 = vcmask 517120
      %171 = vst.msk [vmem:[#allocation3] sm:$0x3] %vm170, 0.0
    $region33: #{tpu_custom_call.1} parent=1 // pred_fallthru
      _
    %v172 = vld [vmem:[%s42] sm:$0xff]
    %v173 = vld [vmem:[%s42 + $0x8] sm:$0xff]
    %v174 = vld [vmem:[%s2] sm:$0xff]
    %v175 = vld [vmem:[%s2 + $0x8] sm:$0xff]
    %v176 = vld [vmem:[%s2 + $0x10] sm:$0xff]
    %v177 = vld [vmem:[%s2 + $0x18] sm:$0xff]
    %v178 = vld [vmem:[%s2 + $0x20] sm:$0xff]
    %v179 = vld [vmem:[%s2 + $0x28] sm:$0xff]
    %v180 = vld [vmem:[%s2 + $0x30] sm:$0xff]
    %v181 = vld [vmem:[%s2 + $0x38] sm:$0xff]
    %vm182 = vcmask 523264
    %v184 = vsel %vm182, %v172, 0
    %v187 = vsel %vm182, %v173, 0
    %189 = vmatprep.subr.mxu0 0.0
    %190 = vmatpush1.msra.mxu0 %v174
    %191 = vmatprep.subr.mxu0 0.0
    %192 = vmatpush1.msra.mxu0 %v175
    %193 = vmatprep.subr.mxu0 0.0
    %194 = vmatpush1.msra.mxu0 %v176
    %195 = vmatprep.subr.mxu0 0.0
    %196 = vmatpush1.msra.mxu0 %v177
    %197 = vmatprep.subr.mxu0 0.0
    %198 = vmatpush1.msra.mxu0 %v178
    %199 = vmatprep.subr.mxu0 0.0
    %200 = vmatpush1.msra.mxu0 %v179
    %201 = vmatprep.subr.mxu0 0.0
    %202 = vmatpush1.msra.mxu0 %v180
    %203 = vmatprep.subr.mxu0 0.0
    %204 = vmatpush1.msra.mxu0 %v181
    %205 = vmatprep.subr.mxu0 0.0
    %206 = vmatpush1.msra.mxu0 0.0
    %207 = vmatprep.subr.mxu0 0.0
    %208 = vmatpush1.msra.mxu0 0.0
    %209 = vmatprep.subr.mxu0 0.0
    %210 = vmatpush1.msra.mxu0 0.0
    %211 = vmatprep.subr.mxu0 0.0
    %212 = vmatpush1.msra.mxu0 0.0
    %213 = vmatprep.subr.mxu0 0.0
    %214 = vmatpush1.msra.mxu0 0.0
    %215 = vmatprep.subr.mxu0 0.0
    %216 = vmatpush1.msra.mxu0 0.0
    %217 = vmatprep.subr.mxu0 0.0
    %218 = vmatpush1.msra.mxu0 0.0
    %219 = vmatprep.subr.mxu0 0.0
    %220 = vmatpush1.msra.mxu0 0.0
    %221 = vmatprep.subr.mxu0 0.0
    %222 = vmatpush1.msra.mxu0 0.0
    %223 = vmatprep.subr.mxu0 0.0
    %224 = vmatpush1.msra.mxu0 0.0
    %225 = vmatprep.subr.mxu0 0.0
    %226 = vmatpush1.msra.mxu0 0.0
    %227 = vmatprep.subr.mxu0 0.0
    %228 = vmatpush1.msra.mxu0 0.0
    %229 = vmatprep.subr.mxu0 0.0
    %230 = vmatpush1.msra.mxu0 0.0
    %231 = vmatprep.subr.mxu0 0.0
    %232 = vmatpush1.msra.mxu0 0.0
    %233 = vmatprep.subr.mxu0 0.0
    %234 = vmatpush1.msra.mxu0 0.0
    %235 = vmatprep.subr.mxu0 0.0
    %236 = vmatpush1.msra.mxu0 0.0
    %237 = vmatprep.subr.mxu0 0.0
    %238 = vmatpush1.msra.mxu0 0.0
    %239 = vmatprep.subr.mxu0 0.0
    %240 = vmatpush1.msra.mxu0 0.0
    %241 = vmatprep.subr.mxu0 0.0
    %242 = vmatpush1.msra.mxu0 0.0
    %243 = vmatprep.subr.mxu0 0.0
    %244 = vmatpush1.msra.mxu0 0.0
    %245 = vmatprep.subr.mxu0 0.0
    %246 = vmatpush1.msra.mxu0 0.0
    %247 = vmatprep.subr.mxu0 0.0
    %248 = vmatpush1.msra.mxu0 0.0
    %249 = vmatprep.subr.mxu0 0.0
    %250 = vmatpush1.msra.mxu0 0.0
    %251 = vmatprep.subr.mxu0 0.0
    %252 = vmatpush1.msra.mxu0 0.0
    %253 = vmatprep.mubr.f32.mxu0 0.0
    %254 = vmatmul.mubr.f32.gmra.mrb[0].mxu0 %v184
    %v255 = vpop.f32.mrb[0].mxu0
    %v256 = vadd.f32 0.0, %v255
    %v257 = vpop.f32.mrb[0].mxu0
    %258 = vmatprep.mubr.f32.mxu0 0.0
    %259 = vmatmul.mubr.f32.gmra.mrb[0].mxu0 %v187
    %v260 = vpop.f32.mrb[0].mxu0
    %v261 = vadd.f32 0.0, %v260
    %v262 = vpop.f32.mrb[0].mxu0
    %263 = vdwg.mxu0
    %v264 = vld [vmem:[#allocation2] sm:$0x1]
    %v265 = vld [vmem:[#allocation2 + $0x1] sm:$0x1]
    %v268 = vlaneseq
    %v269 = vshrl.u32 %v268, 7
    %v270 = vsub.s32 0, %v269
    %v271 = vrot.slane %v264, %v270
    %v272 = vlaneseq
    %v273 = vshrl.u32 %v272, 7
    %v274 = vsub.s32 0, %v273
    %v275 = vrot.slane %v265, %v274
    %v278 = vadd.f32 %v256, %v271
    %v279 = vadd.f32 %v261, %v275
    %v280 = vtanh.pop %v278
    %v281 = vtanh.pop %v279
    %v282 = vld [vmem:[%s6] sm:$0x1]
    %v284 = vlaneseq
    %v285 = vshrl.u32 %v284, 7
    %v286 = vsub.s32 0, %v285
    %v287 = vrot.slane %v282, %v286
    %v289 = vmul.f32 %v280, %v287
    %v290 = vmul.f32 %v281, %v287
    %vm291 = vcmask 261120
    %v292 = vsel %vm291, %v289, 0.0
    %293 = vadd.xlane.f32.xlu0 %v292
    %v294 = vpop.xlane.xlu0 %293
    %v295 = vsel %vm291, %v290, 0.0
    %296 = vadd.xlane.f32.xlu0 %v295
    %v297 = vpop.xlane.xlu0 %296
    %v298 = vmax.f32 %v294, %v297
    %v299 = vsub.f32 %v294, %v298
    %v300 = vsub.f32 %v297, %v298
    %v301 = vmul.f32 %v299, 1.442695
    %v302 = vpow.pop %v301
    %v303 = vmul.f32 %v300, 1.442695
    %v304 = vpow.pop %v303
    %v305 = vadd.f32 %v302, %v304
    %v306 = vrcp.pop %v305
    %v307 = vmul.f32 %v302, %v306
    %v308 = vmul.f32 %v304, %v306
    %v309 = vld [vmem:[#allocation3] sm:$0x3]
    %v310 = vmul.f32 %v307, %v172
    %v311 = vmul.f32 %v308, %v173
    %v312 = vsel %vm182, %v310, 0.0
    %v313 = vrot.slane %v312, 4
    %v314 = vadd.f32 %v312, %v313
    %v315 = vrot.slane %v314, 2
    %v316 = vadd.f32 %v314, %v315
    %v317 = vrot.slane %v316, 1
    %v318 = vadd.f32 %v316, %v317
    %v319 = vsel %vm182, %v311, 0.0
    %v320 = vrot.slane %v319, 4
    %v321 = vadd.f32 %v319, %v320
    %v322 = vrot.slane %v321, 2
    %v323 = vadd.f32 %v321, %v322
    %v324 = vrot.slane %v323, 1
    %v325 = vadd.f32 %v323, %v324
    %vm328 = vcmask 1041409
    %v329 = vsel %vm328, %v325, %v318
    %v331 = vadd.f32 %v309, %v329
    %vm332 = vcmask 517120
    %333 = vst.msk [vmem:[#allocation3] sm:$0x3] %vm332, %v331
    // Predicated region
    $region34: #{tpu_custom_call.1} parent=1 // pred_check
      _
    $region35: #{tpu_custom_call.1} parent=1 // pred_check_branch
      %335 = sbr.rel (0) target = $region37
    $region36: #{tpu_custom_call.1} parent=1 // pred_region
      %s337 = ssub.s32 32, 32
      %338 = vsyncadd [#allocation4], %s337
      %s340 = sshll.u32 [#allocation3], 4
      %s341 = int_to_ptr.vmem [resolvable:$true] %s340
      %343 = dma.vmem_to_hbm [thread:$0]  %s341, 32, %s7, [#allocation4]
    $region37: #{tpu_custom_call.1} parent=1 // pred_fallthru
      _
    // Predicated region
    $region38: #{tpu_custom_call.1} parent=1 // pred_check
      _
    $region39: #{tpu_custom_call.1} parent=1 // pred_check_branch
      %345 = sbr.rel (0) target = $region41
    $region40: #{tpu_custom_call.1} parent=1 // pred_region
      %346 = dma.done [#allocation4], 32
    $region41: #{tpu_custom_call.1} parent=1 // pred_fallthru
      _
    %347 = vsyncpa [#allocation4], 1

// kernel: tpu_custom_call.1
$region0: #{tpu_custom_call.1}
  #allocation0 [shape = 'u32[]', space=smem, size = 0x4, offset = 0x4, fixed_abs, tag = 'smem constant byte address 0x4 - core index']
  #allocation1 [shape = 'u32[144,128]{1,0:T(1,128)}', space=vmem, size = 0x12000, scoped, tag = 'internal scratch']
  #allocation2 [shape = 'f32[2,1,32]{2,1,0:T(1,128)}', space=vmem, size = 0x400, scoped, tag = 'scratch operand']
  %s0 = inlined_call_operand.vmem [shape: f32[2,8,64], index: 0, kind: input, shape index: {}]
  %s1 = inlined_call_operand.vmem [shape: f32[2,32], index: 1, kind: input, shape index: {}]
  %s2 = inlined_call_operand.vmem [shape: f32[64,32], index: 2, kind: input, shape index: {}]
  %s3 = inlined_call_operand.vmem [shape: f32[1,32], index: 3, kind: input, shape index: {}]
  %s4 = inlined_call_operand.vmem [shape: f32[32,32], index: 4, kind: input, shape index: {}]
  %s5 = inlined_call_operand.vmem [shape: f32[1,32], index: 5, kind: input, shape index: {}]
  %s6 = inlined_call_operand.vmem [shape: f32[1,1,32], index: 6, kind: input, shape index: {}]
  %s7 = inlined_call_operand.hbm [shape: f32[1,2,64], index: 7, kind: output, shape index: {}]
  %s8 = sld [smem:[#allocation0]]
  $region42: #{tpu_custom_call.1} parent=0
    _
  %s10 = ssub.s32 1, %s8
  %s11 = scalar_select 0, %s10, %s8
  $region1: #{tpu_custom_call.1} parent=0
    #allocation3 [shape = 'u8[1024]{0}', space=vmem, size = 0x400, scoped, tag = 'output window, operand 0, single buffered']
    #allocation4 [shape = 's32[1]{0}', space=sflag, size = 0x4, scoped, tag = 'scoped memory for tpu_custom_call.1']
    %12 = vsyncpa [#allocation4], 0
    // Predicated region
    $region2: #{tpu_custom_call.1} parent=1 // pred_check
      _
    $region3: #{tpu_custom_call.1} parent=1 // pred_check_branch
      %14 = sbr.rel (0) target = $region5
    $region4: #{tpu_custom_call.1} parent=1 // pred_region
      %s15 = sadd.s32 0, 0
      %p16 = scmp.lt.s32.totalorder %s15, 0
      %s17 = scalar_select %p16, %s15, 0
      %s18 = smul.addr %s17, 8
      %s19 = scalar_lea.vmem %s0, %s18
      %s20 = sadd.s32 0, 0
    $region5: #{tpu_custom_call.1} parent=1 // pred_fallthru
      _
    // Predicated region
    $region6: #{tpu_custom_call.1} parent=1 // pred_check
      _
    $region7: #{tpu_custom_call.1} parent=1 // pred_check_branch
      %22 = sbr.rel (0) target = $region9
    $region8: #{tpu_custom_call.1} parent=1 // pred_region
      _
    $region9: #{tpu_custom_call.1} parent=1 // pred_fallthru
      _
    // Predicated region
    $region10: #{tpu_custom_call.1} parent=1 // pred_check
      _
    $region11: #{tpu_custom_call.1} parent=1 // pred_check_branch
      %24 = sbr.rel (0) target = $region13
    $region12: #{tpu_custom_call.1} parent=1 // pred_region
      _
    $region13: #{tpu_custom_call.1} parent=1 // pred_fallthru
      _
    // Predicated region
    $region14: #{tpu_custom_call.1} parent=1 // pred_check
      _
    $region15: #{tpu_custom_call.1} parent=1 // pred_check_branch
      %26 = sbr.rel (0) target = $region17
    $region16: #{tpu_custom_call.1} parent=1 // pred_region
      _
    $region17: #{tpu_custom_call.1} parent=1 // pred_fallthru
      _
    // Predicated region
    $region18: #{tpu_custom_call.1} parent=1 // pred_check
      _
    $region19: #{tpu_custom_call.1} parent=1 // pred_check_branch
      %28 = sbr.rel (0) target = $region21
    $region20: #{tpu_custom_call.1} parent=1 // pred_region
      _
    $region21: #{tpu_custom_call.1} parent=1 // pred_fallthru
      _
    // Predicated region
    $region22: #{tpu_custom_call.1} parent=1 // pred_check
      _
    $region23: #{tpu_custom_call.1} parent=1 // pred_check_branch
      %30 = sbr.rel (0) target = $region25
    $region24: #{tpu_custom_call.1} parent=1 // pred_region
      _
    $region25: #{tpu_custom_call.1} parent=1 // pred_fallthru
      _
    // Predicated region
    $region26: #{tpu_custom_call.1} parent=1 // pred_check
      _
    $region27: #{tpu_custom_call.1} parent=1 // pred_check_branch
      %32 = sbr.rel (0) target = $region29
    $region28: #{tpu_custom_call.1} parent=1 // pred_region
      _
    $region29: #{tpu_custom_call.1} parent=1 // pred_fallthru
      _
    %s33 = sadd.s32 0, 0
    %p34 = scmp.lt.s32.totalorder %s33, 0
    %s35 = scalar_select %p34, %s33, 0
    %s36 = smul.addr %s35, 8
    %s37 = scalar_lea.vmem %s0, %s36
    %s38 = sadd.s32 0, 0
    %p39 = scmp.lt.s32.totalorder %s38, 0
    %s40 = scalar_select %p39, %s38, 0
    %s41 = smul.addr %s40, 8
    %s42 = scalar_lea.vmem %s0, %s41
    %s43 = sadd.s32 0, 0
    %p44 = scmp.eq.s32.totalorder 0, 0
    // Predicated region
    $region30: #{tpu_custom_call.1} parent=1 // pred_check
      %p45 = pneg %p44
    $region31: #{tpu_custom_call.1} parent=1 // pred_check_branch
      %47 = sbr.rel (%p45) target = $region33
    $region32: #{tpu_custom_call.1} parent=1 // pred_region
      %v48 = vld [vmem:[%s1] sm:$0x3]
      %v49 = vld [vmem:[%s4] sm:$0xff]
      %v50 = vld [vmem:[%s4 + $0x8] sm:$0xff]
      %v51 = vld [vmem:[%s4 + $0x10] sm:$0xff]
      %v52 = vld [vmem:[%s4 + $0x18] sm:$0xff]
      %v53 = vld [vmem:[%s5] sm:$0x1]
      %v55 = vlaneseq
      %v56 = vshrl.u32 %v55, 7
      %v57 = vsub.s32 0, %v56
      %v58 = vrot.slane %v53, %v57
      %vm60 = vcmask 261120
      %v62 = vsel %vm60, %v48, 0
      %64 = vmatprep.subr.mxu0 0.0
      %65 = vmatpush1.msra.mxu0 %v49
      %66 = vmatprep.subr.mxu0 0.0
      %67 = vmatpush1.msra.mxu0 %v50
      %68 = vmatprep.subr.mxu0 0.0
      %69 = vmatpush1.msra.mxu0 %v51
      %70 = vmatprep.subr.mxu0 0.0
      %71 = vmatpush1.msra.mxu0 %v52
      %72 = vmatprep.subr.mxu0 0.0
      %73 = vmatpush1.msra.mxu0 0.0
      %74 = vmatprep.subr.mxu0 0.0
      %75 = vmatpush1.msra.mxu0 0.0
      %76 = vmatprep.subr.mxu0 0.0
      %77 = vmatpush1.msra.mxu0 0.0
      %78 = vmatprep.subr.mxu0 0.0
      %79 = vmatpush1.msra.mxu0 0.0
      %80 = vmatprep.subr.mxu0 0.0
      %81 = vmatpush1.msra.mxu0 0.0
      %82 = vmatprep.subr.mxu0 0.0
      %83 = vmatpush1.msra.mxu0 0.0
      %84 = vmatprep.subr.mxu0 0.0
      %85 = vmatpush1.msra.mxu0 0.0
      %86 = vmatprep.subr.mxu0 0.0
      %87 = vmatpush1.msra.mxu0 0.0
      %88 = vmatprep.subr.mxu0 0.0
      %89 = vmatpush1.msra.mxu0 0.0
      %90 = vmatprep.subr.mxu0 0.0
      %91 = vmatpush1.msra.mxu0 0.0
      %92 = vmatprep.subr.mxu0 0.0
      %93 = vmatpush1.msra.mxu0 0.0
      %94 = vmatprep.subr.mxu0 0.0
      %95 = vmatpush1.msra.mxu0 0.0
      %96 = vmatprep.subr.mxu0 0.0
      %97 = vmatpush1.msra.mxu0 0.0
      %98 = vmatprep.subr.mxu0 0.0
      %99 = vmatpush1.msra.mxu0 0.0
      %100 = vmatprep.subr.mxu0 0.0
      %101 = vmatpush1.msra.mxu0 0.0
      %102 = vmatprep.subr.mxu0 0.0
      %103 = vmatpush1.msra.mxu0 0.0
      %104 = vmatprep.subr.mxu0 0.0
      %105 = vmatpush1.msra.mxu0 0.0
      %106 = vmatprep.subr.mxu0 0.0
      %107 = vmatpush1.msra.mxu0 0.0
      %108 = vmatprep.subr.mxu0 0.0
      %109 = vmatpush1.msra.mxu0 0.0
      %110 = vmatprep.subr.mxu0 0.0
      %111 = vmatpush1.msra.mxu0 0.0
      %112 = vmatprep.subr.mxu0 0.0
      %113 = vmatpush1.msra.mxu0 0.0
      %114 = vmatprep.subr.mxu0 0.0
      %115 = vmatpush1.msra.mxu0 0.0
      %116 = vmatprep.subr.mxu0 0.0
      %117 = vmatpush1.msra.mxu0 0.0
      %118 = vmatprep.subr.mxu0 0.0
      %119 = vmatpush1.msra.mxu0 0.0
      %120 = vmatprep.subr.mxu0 0.0
      %121 = vmatpush1.msra.mxu0 0.0
      %122 = vmatprep.subr.mxu0 0.0
      %123 = vmatpush1.msra.mxu0 0.0
      %124 = vmatprep.subr.mxu0 0.0
      %125 = vmatpush1.msra.mxu0 0.0
      %126 = vmatprep.subr.mxu0 0.0
      %127 = vmatpush1.msra.mxu0 0.0
      %128 = vmatprep.mubr.f32.mxu0 0.0
      %129 = vmatmul.mubr.f32.gmra.mrb[0].mxu0 %v62
      %v130 = vpop.f32.mrb[0].mxu0
      %v131 = vadd.f32 %v58, %v130
      %v132 = vpop.f32.mrb[0].mxu0
      %133 = vdwg.mxu0
      %v134 = vld [vmem:[%s3] sm:$0x1]
      %v136 = vlaneseq
      %v137 = vshrl.u32 %v136, 7
      %v138 = vsub.s32 0, %v137
      %v139 = vrot.slane %v134, %v138
      %v141 = vadd.f32 %v131, %v139
      %v144 = vunpack.c.l.s4 1966171168
      %v145 = vunpack.c.0.s8 %v144
      %v146 = vlaneseq
      %v147 = vshrl.u32 %v146, 7
      %v148 = vsub.s32 %v145, %v147
      %v149 = vrot.slane %v141, %v148
      %v150 = vcombine.high %v149, %v149
      %v152 = vunpack.c.l.s4 1966171168
      %v153 = vunpack.c.0.s8 %v152
      %v154 = vlaneseq
      %v155 = vshrl.u32 %v154, 7
      %v156 = vsub.s32 %v153, %v155
      %v157 = vrot.slane %v149, %v156
      %v159 = vunpack.c.l.s4 1966171168
      %v160 = vunpack.c.0.s8 %v159
      %v161 = vlaneseq
      %v162 = vshrl.u32 %v161, 7
      %v163 = vsub.s32 %v160, %v162
      %v164 = vrot.slane %v150, %v163
      %vm167 = vcmask 253952
      %168 = vst.msk [vmem:[#allocation2] sm:$0x1] %vm167, %v157
      %169 = vst.msk [vmem:[#allocation2 + $0x1] sm:$0x1] %vm167, %v164
      %vm170 = vcmask 517120
      %171 = vst.msk [vmem:[#allocation3] sm:$0x3] %vm170, 0.0
    $region33: #{tpu_custom_call.1} parent=1 // pred_fallthru
      _
    %v172 = vld [vmem:[%s42] sm:$0xff]
    %v173 = vld [vmem:[%s42 + $0x8] sm:$0xff]
    %v174 = vld [vmem:[%s2] sm:$0xff]
    %v175 = vld [vmem:[%s2 + $0x8] sm:$0xff]
    %v176 = vld [vmem:[%s2 + $0x10] sm:$0xff]
    %v177 = vld [vmem:[%s2 + $0x18] sm:$0xff]
    %v178 = vld [vmem:[%s2 + $0x20] sm:$0xff]
    %v179 = vld [vmem:[%s2 + $0x28] sm:$0xff]
    %v180 = vld [vmem:[%s2 + $0x30] sm:$0xff]
    %v181 = vld [vmem:[%s2 + $0x38] sm:$0xff]
    %vm182 = vcmask 523264
    %v184 = vsel %vm182, %v172, 0
    %v187 = vsel %vm182, %v173, 0
    %189 = vmatprep.subr.mxu0 0.0
    %190 = vmatpush1.msra.mxu0 %v174
    %191 = vmatprep.subr.mxu0 0.0
    %192 = vmatpush1.msra.mxu0 %v175
    %193 = vmatprep.subr.mxu0 0.0
    %194 = vmatpush1.msra.mxu0 %v176
    %195 = vmatprep.subr.mxu0 0.0
    %196 = vmatpush1.msra.mxu0 %v177
    %197 = vmatprep.subr.mxu0 0.0
    %198 = vmatpush1.msra.mxu0 %v178
    %199 = vmatprep.subr.mxu0 0.0
    %200 = vmatpush1.msra.mxu0 %v179
    %201 = vmatprep.subr.mxu0 0.0
    %202 = vmatpush1.msra.mxu0 %v180
    %203 = vmatprep.subr.mxu0 0.0
    %204 = vmatpush1.msra.mxu0 %v181
    %205 = vmatprep.subr.mxu0 0.0
    %206 = vmatpush1.msra.mxu0 0.0
    %207 = vmatprep.subr.mxu0 0.0
    %208 = vmatpush1.msra.mxu0 0.0
    %209 = vmatprep.subr.mxu0 0.0
    %210 = vmatpush1.msra.mxu0 0.0
    %211 = vmatprep.subr.mxu0 0.0
    %212 = vmatpush1.msra.mxu0 0.0
    %213 = vmatprep.subr.mxu0 0.0
    %214 = vmatpush1.msra.mxu0 0.0
    %215 = vmatprep.subr.mxu0 0.0
    %216 = vmatpush1.msra.mxu0 0.0
    %217 = vmatprep.subr.mxu0 0.0
    %218 = vmatpush1.msra.mxu0 0.0
    %219 = vmatprep.subr.mxu0 0.0
    %220 = vmatpush1.msra.mxu0 0.0
    %221 = vmatprep.subr.mxu0 0.0
    %222 = vmatpush1.msra.mxu0 0.0
    %223 = vmatprep.subr.mxu0 0.0
    %224 = vmatpush1.msra.mxu0 0.0
    %225 = vmatprep.subr.mxu0 0.0
    %226 = vmatpush1.msra.mxu0 0.0
    %227 = vmatprep.subr.mxu0 0.0
    %228 = vmatpush1.msra.mxu0 0.0
    %229 = vmatprep.subr.mxu0 0.0
    %230 = vmatpush1.msra.mxu0 0.0
    %231 = vmatprep.subr.mxu0 0.0
    %232 = vmatpush1.msra.mxu0 0.0
    %233 = vmatprep.subr.mxu0 0.0
    %234 = vmatpush1.msra.mxu0 0.0
    %235 = vmatprep.subr.mxu0 0.0
    %236 = vmatpush1.msra.mxu0 0.0
    %237 = vmatprep.subr.mxu0 0.0
    %238 = vmatpush1.msra.mxu0 0.0
    %239 = vmatprep.subr.mxu0 0.0
    %240 = vmatpush1.msra.mxu0 0.0
    %241 = vmatprep.subr.mxu0 0.0
    %242 = vmatpush1.msra.mxu0 0.0
    %243 = vmatprep.subr.mxu0 0.0
    %244 = vmatpush1.msra.mxu0 0.0
    %245 = vmatprep.subr.mxu0 0.0
    %246 = vmatpush1.msra.mxu0 0.0
    %247 = vmatprep.subr.mxu0 0.0
    %248 = vmatpush1.msra.mxu0 0.0
    %249 = vmatprep.subr.mxu0 0.0
    %250 = vmatpush1.msra.mxu0 0.0
    %251 = vmatprep.subr.mxu0 0.0
    %252 = vmatpush1.msra.mxu0 0.0
    %253 = vmatprep.mubr.f32.mxu0 0.0
    %254 = vmatmul.mubr.f32.gmra.mrb[0].mxu0 %v184
    %v255 = vpop.f32.mrb[0].mxu0
    %v256 = vadd.f32 0.0, %v255
    %v257 = vpop.f32.mrb[0].mxu0
    %258 = vmatprep.mubr.f32.mxu0 0.0
    %259 = vmatmul.mubr.f32.gmra.mrb[0].mxu0 %v187
    %v260 = vpop.f32.mrb[0].mxu0
    %v261 = vadd.f32 0.0, %v260
    %v262 = vpop.f32.mrb[0].mxu0
    %263 = vdwg.mxu0
    %v264 = vld [vmem:[#allocation2] sm:$0x1]
    %v265 = vld [vmem:[#allocation2 + $0x1] sm:$0x1]
    %v268 = vlaneseq
    %v269 = vshrl.u32 %v268, 7
    %v270 = vsub.s32 0, %v269
    %v271 = vrot.slane %v264, %v270
    %v272 = vlaneseq
    %v273 = vshrl.u32 %v272, 7
    %v274 = vsub.s32 0, %v273
    %v275 = vrot.slane %v265, %v274
    %v278 = vadd.f32 %v256, %v271
    %v279 = vadd.f32 %v261, %v275
    %v280 = vtanh.pop %v278
    %v281 = vtanh.pop %v279
    %v282 = vld [vmem:[%s6] sm:$0x1]
    %v284 = vlaneseq
    %v285 = vshrl.u32 %v284, 7
    %v286 = vsub.s32 0, %v285
    %v287 = vrot.slane %v282, %v286
    %v289 = vmul.f32 %v280, %v287
    %v290 = vmul.f32 %v281, %v287
    %vm291 = vcmask 261120
    %v292 = vsel %vm291, %v289, 0.0
    %293 = vadd.xlane.f32.xlu0 %v292
    %v294 = vpop.xlane.xlu0 %293
    %v295 = vsel %vm291, %v290, 0.0
    %296 = vadd.xlane.f32.xlu0 %v295
    %v297 = vpop.xlane.xlu0 %296
    %v298 = vmax.f32 %v294, %v297
    %v299 = vsub.f32 %v294, %v298
    %v300 = vsub.f32 %v297, %v298
    %v301 = vmul.f32 %v299, 1.442695
    %v302 = vpow.pop %v301
    %v303 = vmul.f32 %v300, 1.442695
    %v304 = vpow.pop %v303
    %v305 = vadd.f32 %v302, %v304
    %v306 = vrcp.pop %v305
    %v307 = vmul.f32 %v302, %v306
    %v308 = vmul.f32 %v304, %v306
    %v309 = vld [vmem:[#allocation3] sm:$0x3]
    %v310 = vmul.f32 %v307, %v172
    %v311 = vmul.f32 %v308, %v173
    %v312 = vsel %vm182, %v310, 0.0
    %v313 = vrot.slane %v312, 4
    %v314 = vadd.f32 %v312, %v313
    %v315 = vrot.slane %v314, 2
    %v316 = vadd.f32 %v314, %v315
    %v317 = vrot.slane %v316, 1
    %v318 = vadd.f32 %v316, %v317
    %v319 = vsel %vm182, %v311, 0.0
    %v320 = vrot.slane %v319, 4
    %v321 = vadd.f32 %v319, %v320
    %v322 = vrot.slane %v321, 2
    %v323 = vadd.f32 %v321, %v322
    %v324 = vrot.slane %v323, 1
    %v325 = vadd.f32 %v323, %v324
    %vm328 = vcmask 1041409
    %v329 = vsel %vm328, %v325, %v318
    %v331 = vadd.f32 %v309, %v329
    %vm332 = vcmask 517120
    %333 = vst.msk [vmem:[#allocation3] sm:$0x3] %vm332, %v331
    // Predicated region
    $region34: #{tpu_custom_call.1} parent=1 // pred_check
      _
    $region35: #{tpu_custom_call.1} parent=1 // pred_check_branch
      %335 = sbr.rel (0) target = $region37
    $region36: #{tpu_custom_call.1} parent=1 // pred_region
      %s337 = ssub.s32 32, 32
      %338 = vsyncadd [#allocation4], %s337
      %s340 = sshll.u32 [#allocation3], 4
      %s341 = int_to_ptr.vmem [resolvable:$true] %s340
      %343 = dma.vmem_to_hbm [thread:$0]  %s341, 32, %s7, [#allocation4]
    $region37: #{tpu_custom_call.1} parent=1 // pred_fallthru
      _
    // Predicated region
    $region38: #{tpu_custom_call.1} parent=1 // pred_check
      _
    $region39: #{tpu_custom_call.1} parent=1 // pred_check_branch
      %345 = sbr.rel (0) target = $region41
    $region40: #{tpu_custom_call.1} parent=1 // pred_region
      %346 = dma.done [#allocation4], 32
    $region41: #{tpu_custom_call.1} parent=1 // pred_fallthru
      _
    %347 = vsyncpa [#allocation4], 1

</llo_original>
